<compile_context>
chip_gen: v6e
topology: v6e:2x2x1
jax: 0.10.0
libtpu: 0.0.40
codegen_flags: <defaults>
</compile_context>

<pallas_src>
import math
import functools

import jax
import jax.numpy as jnp
from jax import lax
from jax.experimental import pallas as pl
from jax.experimental.pallas import tpu as pltpu


def _default_block():
    # Generation-aware default tile: bigger tiles cut grid-step overhead and
    # K/V HBM re-streaming; keep it at 256 on chips with small (64 MiB) VMEM.
    try:
        vmem = pltpu.get_tpu_info().vmem_capacity_bytes
    except Exception:
        return 256
    return 512 if vmem >= (100 << 20) else 256


# --------------------------------------------------------------------------- #
# Kernel 1: fused QKV projection, head-major output
# --------------------------------------------------------------------------- #
def _qkv_proj_kernel(x_ref, w_ref, b_ref, q_ref, k_ref, v_ref, *, scale, hs):
    # x_ref: (1, tq, C)        bf16
    # w_ref: (H, C, 3*hs)      bf16, VMEM-resident (constant index_map)
    # b_ref: (H, 1, 3*hs)      f32,  VMEM-resident
    # q/k/v: (1, 1, tq, hs)    bf16, head-major
    h = pl.program_id(2)
    x = x_ref[0]                                            # (tq, C)
    w = w_ref[h]                                            # (C, 3*hs)
    qkv = jnp.dot(x, w, preferred_element_type=jnp.float32) + b_ref[h]
    q_ref[0, 0] = (qkv[:, 0:hs] * scale).astype(q_ref.dtype)   # fold 1/sqrt(hs)
    k_ref[0, 0] = qkv[:, hs:2 * hs].astype(k_ref.dtype)
    v_ref[0, 0] = qkv[:, 2 * hs:3 * hs].astype(v_ref.dtype)


# --------------------------------------------------------------------------- #
# Kernel 2: flash attention fused with the output projection
# --------------------------------------------------------------------------- #
def _flash_attn_kernel(q_ref, k_ref, v_ref, wp_ref, bp_ref, o_ref,
                       m_sc, l_sc, acc_sc, y_sc, *, block_q, block_k):
    # q_ref:  (1, 1, tq, hs)  bf16 (already scaled by 1/sqrt(hs))
    # k_ref:  (1, 1, tk, hs)  bf16 (stale / clamped content on masked tiles)
    # v_ref:  (1, 1, tk, hs)  bf16
    # wp_ref: (H, hs, C)      bf16, VMEM-resident (constant index_map)
    # bp_ref: (1, C)          f32
    # o_ref:  (1, tq, C)
    h, ki = pl.program_id(2), pl.program_id(3)
    nh, nk = pl.num_programs(2), pl.num_programs(3)
    q_start = pl.program_id(1) * block_q
    k_start = ki * block_k
    q_last = q_start + block_q - 1
    k_last = k_start + block_k - 1

    @pl.when(jnp.logical_and(h == 0, ki == 0))
    def _init_proj_acc():
        y_sc[...] = jnp.zeros(y_sc.shape, jnp.float32)

    @pl.when(ki == 0)
    def _init_head_acc():
        m_sc[...] = jnp.full(m_sc.shape, -jnp.inf, jnp.float32)
        l_sc[...] = jnp.zeros(l_sc.shape, jnp.float32)
        acc_sc[...] = jnp.zeros(acc_sc.shape, jnp.float32)

    def _online_softmax_update(apply_mask):
        q = q_ref[0, 0]                                   # (tq, hs) bf16
        k = k_ref[0, 0]                                   # (tk, hs) bf16
        # QK^T: contract last axes (NT form) -> no explicit transpose of K.
        s = lax.dot_general(q, k, (((1,), (1,)), ((), ())),
                            preferred_element_type=jnp.float32)  # (tq, tk) f32
        if apply_mask:  # only on diagonal tiles (static Python flag)
            row = q_start + lax.broadcasted_iota(jnp.int32, (block_q, block_k), 0)
            col = k_start + lax.broadcasted_iota(jnp.int32, (block_q, block_k), 1)
            s = jnp.where(row >= col, s, -jnp.inf)
        m_prev = m_sc[...]
        m_new = jnp.maximum(m_prev, jnp.max(s, axis=-1, keepdims=True))
        alpha = jnp.exp(m_prev - m_new)
        p = jnp.exp(s - m_new)                             # f32
        l_sc[...] = alpha * l_sc[...] + jnp.sum(p, axis=-1, keepdims=True)
        acc_sc[...] = alpha * acc_sc[...] + jnp.dot(
            p.astype(v_ref.dtype), v_ref[0, 0], preferred_element_type=jnp.float32)
        m_sc[...] = m_new

    # Interior tile (fully below the diagonal): no mask work at all.
    @pl.when(k_last <= q_start)
    def _unmasked_tile():
        _online_softmax_update(apply_mask=False)

    # Diagonal tile: build/apply the causal mask.
    @pl.when(jnp.logical_and(k_start <= q_last, k_last > q_start))
    def _diagonal_tile():
        _online_softmax_update(apply_mask=True)

    # Fully-masked tiles (k_start > q_last) skip compute; their K/V index_maps
    # are clamped on the host side so they also issue no DMA.

    @pl.when(ki == nk - 1)
    def _head_epilogue():
        inv_l = pl.reciprocal(l_sc[...], approx=True)        # EUP, off the VALU
        y_h = (acc_sc[...] * inv_l).astype(wp_ref.dtype)     # (tq, hs) bf16
        # Fused output projection: accumulate this head's contribution.
        y_sc[...] += jnp.dot(y_h, wp_ref[h], preferred_element_type=jnp.float32)

    @pl.when(jnp.logical_and(h == nh - 1, ki == nk - 1))
    def _write_out():
        o_ref[0] = (y_sc[...] + bp_ref[...]).astype(o_ref.dtype)


# --------------------------------------------------------------------------- #
# Host wrapper
# --------------------------------------------------------------------------- #
def causal_self_attention(x, w_qkv, b_qkv, w_proj, b_proj, *, n_head,
                          block_q=None, block_k=None,
                          compute_dtype=jnp.bfloat16):
    """x: (B, T, C). Weights pre-transposed: w_qkv (C, 3C), w_proj (C, C)."""
    B, T, C = x.shape
    assert C % n_head == 0
    hs = C // n_head
    scale = 1.0 / math.sqrt(hs)

    if block_q is None:
        block_q = _default_block()
    if block_k is None:
        block_k = _default_block()
    block_q = min(block_q, T)
    block_k = min(block_k, T)
    assert T % block_q == 0 and T % block_k == 0
    nq = T // block_q
    nk = T // block_k

    # ---- one-time host-side weight re-layout (layout plumbing, not compute) --
    f32 = jnp.float32

    def _head_w(i):   # (C, C) column block of w_qkv -> (H, C, hs)
        return w_qkv[:, i * C:(i + 1) * C].reshape(C, n_head, hs).transpose(1, 0, 2)

    def _head_b(i):   # (C,) -> (H, 1, hs)
        return b_qkv[i * C:(i + 1) * C].reshape(n_head, 1, hs)

    # Fused per-head weight stack (H, C, 3*hs) with [q | k | v] along the last axis.
    w_pack = jnp.concatenate([_head_w(0), _head_w(1), _head_w(2)],
                             axis=-1).astype(compute_dtype)
    b_pack = jnp.concatenate([_head_b(0), _head_b(1), _head_b(2)],
                             axis=-1).astype(f32)
    wp = w_proj.reshape(n_head, hs, C).astype(compute_dtype)   # (H, hs, C)
    bp = b_proj.reshape(1, C).astype(f32)
    x_c = x.astype(compute_dtype)

    vmem_budget = pltpu.CompilerParams(
        dimension_semantics=("parallel", "parallel", "arbitrary"),
        vmem_limit_bytes=48 << 20)

    # ---- kernel 1: fused QKV projection, head-major output -------------------
    qkv_kernel = functools.partial(_qkv_proj_kernel, scale=scale, hs=hs)
    q_hd, k_hd, v_hd = pl.pallas_call(
        qkv_kernel,
        out_shape=(
            jax.ShapeDtypeStruct((B, n_head, T, hs), compute_dtype),
            jax.ShapeDtypeStruct((B, n_head, T, hs), compute_dtype),
            jax.ShapeDtypeStruct((B, n_head, T, hs), compute_dtype),
        ),
        grid_spec=pltpu.PrefetchScalarGridSpec(
            num_scalar_prefetch=0,
            grid=(B, nq, n_head),
            in_specs=[
                # x is resident across the innermost head axis (index_map is
                # independent of h) -> fetched once per (b, q-tile).
                pl.BlockSpec((1, block_q, C), lambda b, t, h: (b, t, 0)),
                # Full fused weight / bias stacks resident in VMEM.
                pl.BlockSpec((n_head, C, 3 * hs), lambda b, t, h: (0, 0, 0)),
                pl.BlockSpec((n_head, 1, 3 * hs), lambda b, t, h: (0, 0, 0)),
            ],
            out_specs=[
                pl.BlockSpec((1, 1, block_q, hs), lambda b, t, h: (b, h, t, 0)),
                pl.BlockSpec((1, 1, block_q, hs), lambda b, t, h: (b, h, t, 0)),
                pl.BlockSpec((1, 1, block_q, hs), lambda b, t, h: (b, h, t, 0)),
            ],
        ),
        compiler_params=vmem_budget,
    )(x_c, w_pack, b_pack)

    # ---- kernel 2: flash attention fused with the output projection ----------
    # K/V index_maps clamped at the causal diagonal: on fully-masked kv tiles
    # the block index does not change, so Pallas issues no new DMA.
    def _kv_index(b, qi, h, ki):
        last_needed = ((qi + 1) * block_q - 1) // block_k
        return (b, h, jnp.minimum(ki, last_needed), 0)

    attn_kernel = functools.partial(
        _flash_attn_kernel, block_q=block_q, block_k=block_k)
    out = pl.pallas_call(
        attn_kernel,
        out_shape=jax.ShapeDtypeStruct((B, T, C), x.dtype),
        grid_spec=pltpu.PrefetchScalarGridSpec(
            num_scalar_prefetch=0,
            grid=(B, nq, n_head, nk),
            in_specs=[
                pl.BlockSpec((1, 1, block_q, hs),
                             lambda b, qi, h, ki: (b, h, qi, 0)),           # q
                pl.BlockSpec((1, 1, block_k, hs), _kv_index),               # k
                pl.BlockSpec((1, 1, block_k, hs), _kv_index),               # v
                # Whole output-projection weight resident; head slice taken
                # inside the kernel epilogue (wp_ref[h]).
                pl.BlockSpec((n_head, hs, C),
                             lambda b, qi, h, ki: (0, 0, 0)),               # wproj
                pl.BlockSpec((1, C), lambda b, qi, h, ki: (0, 0)),          # bproj
            ],
            out_specs=pl.BlockSpec((1, block_q, C),
                                   lambda b, qi, h, ki: (b, qi, 0)),
            scratch_shapes=[
                pltpu.VMEM((block_q, 1), jnp.float32),    # running max  m
                pltpu.VMEM((block_q, 1), jnp.float32),    # running sum  l
                pltpu.VMEM((block_q, hs), jnp.float32),   # per-head out acc
                pltpu.VMEM((block_q, C), jnp.float32),    # projected out acc
            ],
        ),
        compiler_params=pltpu.CompilerParams(
            dimension_semantics=("parallel", "parallel", "arbitrary", "arbitrary"),
            vmem_limit_bytes=48 << 20),
    )(q_hd, k_hd, v_hd, wp, bp)
    return out


# --------------------------------------------------------------------------- #
# Pure-JAX f32 reference mirroring the PyTorch forward
# --------------------------------------------------------------------------- #
def reference(x, w_qkv, b_qkv, w_proj, b_proj, *, n_head):
    B, T, C = x.shape
    hs = C // n_head
    qkv = x @ w_qkv + b_qkv                                  # (B, T, 3C)
    q, k, v = jnp.split(qkv, 3, axis=2)
    q = q.reshape(B, T, n_head, hs).transpose(0, 2, 1, 3)    # (B, H, T, hs)
    k = k.reshape(B, T, n_head, hs).transpose(0, 2, 1, 3)
    v = v.reshape(B, T, n_head, hs).transpose(0, 2, 1, 3)
    att = jnp.einsum('bhqd,bhkd->bhqk', q, k) / math.sqrt(hs)
    mask = jnp.tril(jnp.ones((T, T), dtype=bool))
    att = jnp.where(mask[None, None], att, float('-inf'))
    att = jax.nn.softmax(att, axis=-1)
    y = jnp.einsum('bhqk,bhkd->bhqd', att, v)
    y = y.transpose(0, 2, 1, 3).reshape(B, T, C)
    return y @ w_proj + b_proj


if __name__ == "__main__":
    def _make_inputs(key, B, T, C):
        kx, k1, k2, k3, k4 = jax.random.split(key, 5)
        x = jax.random.normal(kx, (B, T, C), dtype=jnp.float32)
        bound = 1.0 / math.sqrt(C)
        w_qkv = jax.random.uniform(k1, (C, 3 * C), jnp.float32, -bound, bound)
        b_qkv = jax.random.uniform(k2, (3 * C,), jnp.float32, -bound, bound)
        w_proj = jax.random.uniform(k3, (C, C), jnp.float32, -bound, bound)
        b_proj = jax.random.uniform(k4, (C,), jnp.float32, -bound, bound)
        return x, w_qkv, b_qkv, w_proj, b_proj

    key = jax.random.PRNGKey(0)
    k_a, k_b = jax.random.split(key)

    # Config A: multi-tile, block_q != block_k -> exercises the diagonal mask,
    # the fully-masked DMA clamp/skip, and cross-head accumulation over tiles.
    B, T, C, n_head = 2, 32, 32, 4
    args = _make_inputs(k_a, B, T, C)
    out = causal_self_attention(*args, n_head=n_head, block_q=16, block_k=8)
    out = jax.block_until_ready(out)
    ref = reference(*args, n_head=n_head)
    assert out.shape == (B, T, C)
    err = float(jnp.max(jnp.abs(out.astype(jnp.float32) - ref)))
    assert jnp.allclose(out.astype(jnp.float32), ref, atol=5e-2, rtol=5e-2), (
        f"config A mismatch vs reference: max abs err {err}")

    # Config B: small single-tile config with the generation-aware default
    # blocks (clamped to T), matching the module's tiny block_size setting.
    B, T, C, n_head = 2, 8, 32, 4
    args = _make_inputs(k_b, B, T, C)
    out = causal_self_attention(*args, n_head=n_head)
    out = jax.block_until_ready(out)
    ref = reference(*args, n_head=n_head)
    assert out.shape == (B, T, C)
    err = float(jnp.max(jnp.abs(out.astype(jnp.float32) - ref)))
    assert jnp.allclose(out.astype(jnp.float32), ref, atol=5e-2, rtol=5e-2), (
        f"config B mismatch vs reference: max abs err {err}")

    print("KERNEL_OK")
</pallas_src>

<mosaic_0001>
module attributes {stable_mosaic.version = 11 : i64} {
  func.func @_qkv_proj_kernel(%arg0: i32, %arg1: i32, %arg2: i32, %arg3: memref<1x16x32xbf16, #tpu.memory_space<vmem>>, %arg4: memref<4x32x24xbf16, #tpu.memory_space<vmem>>, %arg5: memref<4x1x24xf32, #tpu.memory_space<vmem>>, %arg6: memref<1x1x16x8xbf16, #tpu.memory_space<vmem>>, %arg7: memref<1x1x16x8xbf16, #tpu.memory_space<vmem>>, %arg8: memref<1x1x16x8xbf16, #tpu.memory_space<vmem>>) attributes {dimension_semantics = [#tpu.dimension_semantics<parallel>, #tpu.dimension_semantics<parallel>, #tpu.dimension_semantics<arbitrary>], iteration_bounds = array<i64: 2, 2, 4>, scalar_prefetch = 0 : i64, scratch_operands = 0 : i64, tpu.core_type = #tpu.core_type<tc>, window_params = [{transform_indices = @transform_0, window_bounds = array<i64: 1, 16, 32>}, {pipeline_mode = #tpu.pipeline_mode<synchronous>, transform_indices = @transform_1, window_bounds = array<i64: 4, 32, 24>}, {pipeline_mode = #tpu.pipeline_mode<synchronous>, transform_indices = @transform_2, window_bounds = array<i64: 4, 1, 24>}, {transform_indices = @transform_3, window_bounds = array<i64: 1, 1, 16, 8>}, {transform_indices = @transform_4, window_bounds = array<i64: 1, 1, 16, 8>}, {transform_indices = @transform_5, window_bounds = array<i64: 1, 1, 16, 8>}]} {
    %c0 = arith.constant 0 : index
    %c0_0 = arith.constant 0 : index
    %c0_1 = arith.constant 0 : index
    %0 = vector.load %arg3[%c0, %c0_0, %c0_1] : memref<1x16x32xbf16, #tpu.memory_space<vmem>>, vector<1x16x32xbf16>
    %1 = vector.shape_cast %0 : vector<1x16x32xbf16> to vector<16x32xbf16>
    %2 = arith.index_cast %arg2 : i32 to index
    %c0_2 = arith.constant 0 : index
    %c0_3 = arith.constant 0 : index
    %3 = vector.load %arg4[%2, %c0_2, %c0_3] : memref<4x32x24xbf16, #tpu.memory_space<vmem>>, vector<1x32x24xbf16>
    %4 = vector.shape_cast %3 : vector<1x32x24xbf16> to vector<32x24xbf16>
    %cst = arith.constant dense<0.000000e+00> : vector<16x24xf32>
    %5 = tpu.matmul %1, %4, %cst {dimension_numbers = #tpu.dot_dimension_numbers<[1], [0], [0], [1], [0, 0, 1, 1], [], []>} : vector<16x32xbf16>, vector<32x24xbf16>, vector<16x24xf32> -> vector<16x24xf32>
    %6 = arith.index_cast %arg2 : i32 to index
    %c0_4 = arith.constant 0 : index
    %c0_5 = arith.constant 0 : index
    %7 = vector.load %arg5[%6, %c0_4, %c0_5] : memref<4x1x24xf32, #tpu.memory_space<vmem>>, vector<1x1x24xf32>
    %8 = vector.shape_cast %7 : vector<1x1x24xf32> to vector<1x24xf32>
    %9 = vector.broadcast %8 : vector<1x24xf32> to vector<16x24xf32>
    %10 = arith.addf %5, %9 : vector<16x24xf32>
    %11 = vector.extract_strided_slice %10 {offsets = [0, 0], sizes = [16, 8], strides = [1, 1]} : vector<16x24xf32> to vector<16x8xf32>
    %cst_6 = arith.constant 0.353553385 : f32
    %12 = vector.broadcast %cst_6 : f32 to vector<16x8xf32>
    %13 = arith.mulf %11, %12 : vector<16x8xf32>
    %14 = arith.truncf %13 : vector<16x8xf32> to vector<16x8xbf16>
    %c0_7 = arith.constant 0 : index
    %c0_8 = arith.constant 0 : index
    %c0_9 = arith.constant 0 : index
    %c0_10 = arith.constant 0 : index
    %15 = vector.load %arg6[%c0_7, %c0_8, %c0_9, %c0_10] : memref<1x1x16x8xbf16, #tpu.memory_space<vmem>>, vector<1x1x16x8xbf16>
    %16 = vector.shape_cast %15 : vector<1x1x16x8xbf16> to vector<16x8xbf16>
    %17 = vector.shape_cast %14 : vector<16x8xbf16> to vector<1x1x16x8xbf16>
    tpu.vector_store %arg6[%c0_7, %c0_8, %c0_9, %c0_10], %17 {strides = array<i32>} : memref<1x1x16x8xbf16, #tpu.memory_space<vmem>>, vector<1x1x16x8xbf16>,
    %18 = vector.extract_strided_slice %10 {offsets = [0, 8], sizes = [16, 8], strides = [1, 1]} : vector<16x24xf32> to vector<16x8xf32>
    %19 = arith.truncf %18 : vector<16x8xf32> to vector<16x8xbf16>
    %c0_11 = arith.constant 0 : index
    %c0_12 = arith.constant 0 : index
    %c0_13 = arith.constant 0 : index
    %c0_14 = arith.constant 0 : index
    %20 = vector.load %arg7[%c0_11, %c0_12, %c0_13, %c0_14] : memref<1x1x16x8xbf16, #tpu.memory_space<vmem>>, vector<1x1x16x8xbf16>
    %21 = vector.shape_cast %20 : vector<1x1x16x8xbf16> to vector<16x8xbf16>
    %22 = vector.shape_cast %19 : vector<16x8xbf16> to vector<1x1x16x8xbf16>
    tpu.vector_store %arg7[%c0_11, %c0_12, %c0_13, %c0_14], %22 {strides = array<i32>} : memref<1x1x16x8xbf16, #tpu.memory_space<vmem>>, vector<1x1x16x8xbf16>,
    %23 = vector.extract_strided_slice %10 {offsets = [0, 16], sizes = [16, 8], strides = [1, 1]} : vector<16x24xf32> to vector<16x8xf32>
    %24 = arith.truncf %23 : vector<16x8xf32> to vector<16x8xbf16>
    %c0_15 = arith.constant 0 : index
    %c0_16 = arith.constant 0 : index
    %c0_17 = arith.constant 0 : index
    %c0_18 = arith.constant 0 : index
    %25 = vector.load %arg8[%c0_15, %c0_16, %c0_17, %c0_18] : memref<1x1x16x8xbf16, #tpu.memory_space<vmem>>, vector<1x1x16x8xbf16>
    %26 = vector.shape_cast %25 : vector<1x1x16x8xbf16> to vector<16x8xbf16>
    %27 = vector.shape_cast %24 : vector<16x8xbf16> to vector<1x1x16x8xbf16>
    tpu.vector_store %arg8[%c0_15, %c0_16, %c0_17, %c0_18], %27 {strides = array<i32>} : memref<1x1x16x8xbf16, #tpu.memory_space<vmem>>, vector<1x1x16x8xbf16>,
    return
  }
  func.func @transform_0(%arg0: i32, %arg1: i32, %arg2: i32) -> (i32, i32, i32) {
    %c0_i32 = arith.constant 0 : i32
    %c0_i32_0 = arith.constant 0 : i32
    return %arg0, %arg1, %c0_i32 : i32, i32, i32
  }
  func.func @transform_1(%arg0: i32, %arg1: i32, %arg2: i32) -> (i32, i32, i32) {
    %c0_i32 = arith.constant 0 : i32
    %c0_i32_0 = arith.constant 0 : i32
    %c0_i32_1 = arith.constant 0 : i32
    %c0_i32_2 = arith.constant 0 : i32
    return %c0_i32, %c0_i32_0, %c0_i32_1 : i32, i32, i32
  }
  func.func @transform_2(%arg0: i32, %arg1: i32, %arg2: i32) -> (i32, i32, i32) {
    %c0_i32 = arith.constant 0 : i32
    %c0_i32_0 = arith.constant 0 : i32
    %c0_i32_1 = arith.constant 0 : i32
    %c0_i32_2 = arith.constant 0 : i32
    return %c0_i32, %c0_i32_0, %c0_i32_1 : i32, i32, i32
  }
  func.func @transform_3(%arg0: i32, %arg1: i32, %arg2: i32) -> (i32, i32, i32, i32) {
    %c0_i32 = arith.constant 0 : i32
    %c0_i32_0 = arith.constant 0 : i32
    return %arg0, %arg2, %arg1, %c0_i32 : i32, i32, i32, i32
  }
  func.func @transform_4(%arg0: i32, %arg1: i32, %arg2: i32) -> (i32, i32, i32, i32) {
    %c0_i32 = arith.constant 0 : i32
    %c0_i32_0 = arith.constant 0 : i32
    return %arg0, %arg2, %arg1, %c0_i32 : i32, i32, i32, i32
  }
  func.func @transform_5(%arg0: i32, %arg1: i32, %arg2: i32) -> (i32, i32, i32, i32) {
    %c0_i32 = arith.constant 0 : i32
    %c0_i32_0 = arith.constant 0 : i32
    return %arg0, %arg2, %arg1, %c0_i32 : i32, i32, i32, i32
  }
}

</mosaic_0001>

<llo_original>
// kernel: tpu_custom_call.1
$region0: #{tpu_custom_call.1}
  #allocation0 [shape = 'u32[]', space=smem, size = 0x4, offset = 0x4, fixed_abs, tag = 'smem constant byte address 0x4 - core index']
  #allocation1 [shape = 'u32[144,128]{1,0:T(1,128)}', space=vmem, size = 0x12000, scoped, tag = 'internal scratch']
  %s0 = inlined_call_operand.vmem [shape: bf16[2,32,32], index: 0, kind: input, shape index: {}]
  %s1 = inlined_call_operand.vmem [shape: bf16[4,32,24], index: 1, kind: input, shape index: {}]
  %s2 = inlined_call_operand.vmem [shape: f32[4,1,24], index: 2, kind: input, shape index: {}]
  %s3 = inlined_call_operand.vmem [shape: bf16[2,4,32,8], index: 3, kind: output, shape index: {0}]
  %s4 = inlined_call_operand.vmem [shape: bf16[2,4,32,8], index: 4, kind: output, shape index: {1}]
  %s5 = inlined_call_operand.vmem [shape: bf16[2,4,32,8], index: 5, kind: output, shape index: {2}]
  %6 = xla_tuple %s3, %s4, %s5
  %s7 = sld [smem:[#allocation0]]
  $region61: #{tpu_custom_call.1} parent=0
    _
  %s9 = ssub.s32 1, %s7
  %s10 = scalar_select 0, %s9, %s7
  loop: start=0, step=1, limit=18
  $region2: #{tpu_custom_call.1} parent=0 // loop_pre_header
    _
  $region3: #{tpu_custom_call.1} parent=0 // loop_header
    %s12 = sphi 0, %s16
    %p13 = scmp.ge.s32.totalorder %s12, 18
    %s19 = sphi 0, %s38
    %s20 = sphi 0, %s34
    %s21 = sphi 0, %s30
    %s22 = sphi 0, %s19
    %s23 = sphi 0, %s20
    %s24 = sphi 0, %s21
    %s25 = sphi 0, %s22
    %s26 = sphi 0, %s23
    %s27 = sphi 0, %s24
    %s43 = sphi 0, %s45
    %s46 = sphi 0, %s43
    %s47 = sphi 0, %s46
    %s63 = sphi 0, %s47
    %s67 = sphi 0, %s67
    %s69 = sphi 0, %s67
    %s70 = sphi 0, %s69
    %s84 = sphi 0, %s70
    %s88 = sphi 0, %s88
    %s90 = sphi 0, %s88
    %s91 = sphi 0, %s90
    %s105 = sphi 0, %s91
    %s115 = sphi 0, %s117
    %s118 = sphi 0, %s115
    %s119 = sphi 0, %s118
    %s135 = sphi 0, %s119
    %s145 = sphi 0, %s147
    %s148 = sphi 0, %s145
    %s149 = sphi 0, %s148
    %s165 = sphi 0, %s149
    %s175 = sphi 0, %s177
    %s178 = sphi 0, %s175
    %s179 = sphi 0, %s178
    %s195 = sphi 0, %s179
  $region4: #{tpu_custom_call.1} parent=0 // loop_header_branch
    %15 = sbr.rel (%p13) target = $region8
  $region5: #{tpu_custom_call.1} parent=0 // loop_body
    %s17 = ssub.s32 %s12, 1
    %s18 = ssub.s32 %s12, 2
    %s28 = sadd.s32 1, %s21
    %p29 = scmp.ge.s32.totalorder %s28, 4
    %s30 = scalar_select %p29, 0, %s28
    %s31 = sadd.s32 1, %s20
    %s32 = scalar_select %p29, %s31, %s20
    %p33 = scmp.ge.s32.totalorder %s32, 2
    %s34 = scalar_select %p33, 0, %s32
    %s35 = sadd.s32 1, %s19
    %s36 = scalar_select %p33, %s35, %s19
    %p37 = scmp.ge.s32.totalorder %s36, 2
    %s38 = scalar_select %p37, 0, %s36
    %s39 = ssub.s32 %s19, %s38
    %s40 = ssub.s32 %s20, %s34
    %s41 = sor.u32 %s39, %s40
    %p42 = scmp.eq.s32.totalorder %s41, 0
    %s44 = sadd.s32 %s43, 1
    %s45 = scalar_select %p42, %s43, %s44
    %p48 = pneg %p42
    %p49 = scmp.eq.s32.totalorder %s12, 15
    %p50 = por %p48, %p49
    %p51 = scmp.ne.s32.totalorder %s43, %s46
    %p52 = scmp.eq.s32.totalorder %s12, 0
    %p53 = por %p51, %p52
    %p54 = scmp.ne.s32.totalorder %s43, %s46
    %p55 = scmp.eq.s32.totalorder %s17, 15
    %p56 = por %p54, %p55
    %p57 = scmp.ne.s32.totalorder %s46, %s47
    %p58 = scmp.eq.s32.totalorder %s17, 0
    %p59 = por %p57, %p58
    %p60 = scmp.ne.s32.totalorder %s46, %s47
    %p61 = scmp.eq.s32.totalorder %s18, 15
    %p62 = por %p60, %p61
    %p64 = scmp.ne.s32.totalorder %s47, %s63
    %p65 = scmp.eq.s32.totalorder %s18, 0
    %p66 = por %p64, %p65
    %s68 = sadd.s32 %s67, 1
    %p71 = scmp.eq.s32.totalorder %s12, 15
    %p72 = scmp.ne.s32.totalorder %s67, %s69
    %p73 = scmp.eq.s32.totalorder %s12, 0
    %p74 = por %p72, %p73
    %p75 = scmp.ne.s32.totalorder %s67, %s69
    %p76 = scmp.eq.s32.totalorder %s17, 15
    %p77 = por %p75, %p76
    %p78 = scmp.ne.s32.totalorder %s69, %s70
    %p79 = scmp.eq.s32.totalorder %s17, 0
    %p80 = por %p78, %p79
    %p81 = scmp.ne.s32.totalorder %s69, %s70
    %p82 = scmp.eq.s32.totalorder %s18, 15
    %p83 = por %p81, %p82
    %p85 = scmp.ne.s32.totalorder %s70, %s84
    %p86 = scmp.eq.s32.totalorder %s18, 0
    %p87 = por %p85, %p86
    %s89 = sadd.s32 %s88, 1
    %p92 = scmp.eq.s32.totalorder %s12, 15
    %p93 = scmp.ne.s32.totalorder %s88, %s90
    %p94 = scmp.eq.s32.totalorder %s12, 0
    %p95 = por %p93, %p94
    %p96 = scmp.ne.s32.totalorder %s88, %s90
    %p97 = scmp.eq.s32.totalorder %s17, 15
    %p98 = por %p96, %p97
    %p99 = scmp.ne.s32.totalorder %s90, %s91
    %p100 = scmp.eq.s32.totalorder %s17, 0
    %p101 = por %p99, %p100
    %p102 = scmp.ne.s32.totalorder %s90, %s91
    %p103 = scmp.eq.s32.totalorder %s18, 15
    %p104 = por %p102, %p103
    %p106 = scmp.ne.s32.totalorder %s91, %s105
    %p107 = scmp.eq.s32.totalorder %s18, 0
    %p108 = por %p106, %p107
    %s109 = ssub.s32 %s19, %s38
    %s110 = ssub.s32 %s21, %s30
    %s111 = sor.u32 %s109, %s110
    %s112 = ssub.s32 %s20, %s34
    %s113 = sor.u32 %s111, %s112
    %p114 = scmp.eq.s32.totalorder %s113, 0
    %s116 = sadd.s32 %s115, 1
    %s117 = scalar_select %p114, %s115, %s116
    %p120 = pneg %p114
    %p121 = scmp.eq.s32.totalorder %s12, 15
    %p122 = por %p120, %p121
    %p123 = scmp.ne.s32.totalorder %s115, %s118
    %p124 = scmp.eq.s32.totalorder %s12, 0
    %p125 = por %p123, %p124
    %p126 = scmp.ne.s32.totalorder %s115, %s118
    %p127 = scmp.eq.s32.totalorder %s17, 15
    %p128 = por %p126, %p127
    %p129 = scmp.ne.s32.totalorder %s118, %s119
    %p130 = scmp.eq.s32.totalorder %s17, 0
    %p131 = por %p129, %p130
    %p132 = scmp.ne.s32.totalorder %s118, %s119
    %p133 = scmp.eq.s32.totalorder %s18, 15
    %p134 = por %p132, %p133
    %p136 = scmp.ne.s32.totalorder %s119, %s135
    %p137 = scmp.eq.s32.totalorder %s18, 0
    %p138 = por %p136, %p137
    %s139 = ssub.s32 %s19, %s38
    %s140 = ssub.s32 %s21, %s30
    %s141 = sor.u32 %s139, %s140
    %s142 = ssub.s32 %s20, %s34
    %s143 = sor.u32 %s141, %s142
    %p144 = scmp.eq.s32.totalorder %s143, 0
    %s146 = sadd.s32 %s145, 1
    %s147 = scalar_select %p144, %s145, %s146
    %p150 = pneg %p144
    %p151 = scmp.eq.s32.totalorder %s12, 15
    %p152 = por %p150, %p151
    %p153 = scmp.ne.s32.totalorder %s145, %s148
    %p154 = scmp.eq.s32.totalorder %s12, 0
    %p155 = por %p153, %p154
    %p156 = scmp.ne.s32.totalorder %s145, %s148
    %p157 = scmp.eq.s32.totalorder %s17, 15
    %p158 = por %p156, %p157
    %p159 = scmp.ne.s32.totalorder %s148, %s149
    %p160 = scmp.eq.s32.totalorder %s17, 0
    %p161 = por %p159, %p160
    %p162 = scmp.ne.s32.totalorder %s148, %s149
    %p163 = scmp.eq.s32.totalorder %s18, 15
    %p164 = por %p162, %p163
    %p166 = scmp.ne.s32.totalorder %s149, %s165
    %p167 = scmp.eq.s32.totalorder %s18, 0
    %p168 = por %p166, %p167
    %s169 = ssub.s32 %s19, %s38
    %s170 = ssub.s32 %s21, %s30
    %s171 = sor.u32 %s169, %s170
    %s172 = ssub.s32 %s20, %s34
    %s173 = sor.u32 %s171, %s172
    %p174 = scmp.eq.s32.totalorder %s173, 0
    %s176 = sadd.s32 %s175, 1
    %s177 = scalar_select %p174, %s175, %s176
    %p180 = pneg %p174
    %p181 = scmp.eq.s32.totalorder %s12, 15
    %p182 = por %p180, %p181
    %p183 = scmp.ne.s32.totalorder %s175, %s178
    %p184 = scmp.eq.s32.totalorder %s12, 0
    %p185 = por %p183, %p184
    %p186 = scmp.ne.s32.totalorder %s175, %s178
    %p187 = scmp.eq.s32.totalorder %s17, 15
    %p188 = por %p186, %p187
    %p189 = scmp.ne.s32.totalorder %s178, %s179
    %p190 = scmp.eq.s32.totalorder %s17, 0
    %p191 = por %p189, %p190
    %p192 = scmp.ne.s32.totalorder %s178, %s179
    %p193 = scmp.eq.s32.totalorder %s18, 15
    %p194 = por %p192, %p193
    %p196 = scmp.ne.s32.totalorder %s179, %s195
    %p197 = scmp.eq.s32.totalorder %s18, 0
    %p198 = por %p196, %p197
    %p199 = scmp.le.s32.totalorder 1, %s12
    %p200 = scmp.lt.s32.totalorder %s12, 17
    %p201 = pnand %p199, %p200
    %p202 = pneg %p201
    // Predicated region
    $region9: #{tpu_custom_call.1} parent=5 // pred_check
      _
    $region10: #{tpu_custom_call.1} parent=5 // pred_check_branch
      %204 = sbr.rel (%p201) target = $region12
    $region11: #{tpu_custom_call.1} parent=5 // pred_region
      %s205 = ssub.s32 %s12, 1
      // Predicated region
      $region13: #{tpu_custom_call.1} parent=11 // pred_check
        %p206 = pneg %p80
      $region14: #{tpu_custom_call.1} parent=11 // pred_check_branch
        %208 = sbr.rel (%p206) target = $region16
      $region15: #{tpu_custom_call.1} parent=11 // pred_region
        _
      $region16: #{tpu_custom_call.1} parent=11 // pred_fallthru
        _
      // Predicated region
      $region17: #{tpu_custom_call.1} parent=11 // pred_check
        %p209 = pneg %p101
      $region18: #{tpu_custom_call.1} parent=11 // pred_check_branch
        %211 = sbr.rel (%p209) target = $region20
      $region19: #{tpu_custom_call.1} parent=11 // pred_region
        _
      $region20: #{tpu_custom_call.1} parent=11 // pred_fallthru
        _
    $region12: #{tpu_custom_call.1} parent=5 // pred_fallthru
      _
    %p212 = scmp.lt.s32.totalorder %s12, 16
    // Predicated region
    $region21: #{tpu_custom_call.1} parent=5 // pred_check
      %p213 = pneg %p212
    $region22: #{tpu_custom_call.1} parent=5 // pred_check_branch
      %215 = sbr.rel (%p213) target = $region24
    $region23: #{tpu_custom_call.1} parent=5 // pred_region
      // Predicated region
      $region25: #{tpu_custom_call.1} parent=23 // pred_check
        %p216 = pneg %p53
      $region26: #{tpu_custom_call.1} parent=23 // pred_check_branch
        %218 = sbr.rel (%p216) target = $region28
      $region27: #{tpu_custom_call.1} parent=23 // pred_region
        %s219 = smul.u32 2, %s20
        %p220 = scmp.lt.s32.totalorder %s19, 1
        %s221 = scalar_select %p220, %s19, 1
        %p222 = scmp.lt.s32.totalorder %s219, 3
        %s223 = scalar_select %p222, %s219, 3
        %s224 = smul.addr %s221, 4
        %s225 = sadd.s32 %s223, %s224
        %s226 = smul.addr %s225, 4
        %s227 = scalar_lea.vmem %s0, %s226
        %s228 = smul.u32 2, %s20
      $region28: #{tpu_custom_call.1} parent=23 // pred_fallthru
        _
    $region24: #{tpu_custom_call.1} parent=5 // pred_fallthru
      _
    %p229 = scmp.le.s32.totalorder 1, %s12
    %p230 = scmp.lt.s32.totalorder %s12, 17
    %p231 = pnand %p229, %p230
    %p232 = pneg %p231
    // Predicated region
    $region29: #{tpu_custom_call.1} parent=5 // pred_check
      _
    $region30: #{tpu_custom_call.1} parent=5 // pred_check_branch
      %234 = sbr.rel (%p231) target = $region32
    $region31: #{tpu_custom_call.1} parent=5 // pred_region
      %s235 = ssub.s32 %s12, 1
      %s236 = smul.u32 2, %s23
      %p237 = scmp.lt.s32.totalorder %s22, 1
      %s238 = scalar_select %p237, %s22, 1
      %p239 = scmp.lt.s32.totalorder %s236, 3
      %s240 = scalar_select %p239, %s236, 3
      %s241 = smul.addr %s238, 4
      %s242 = sadd.s32 %s240, %s241
      %s243 = smul.addr %s242, 4
      %s244 = scalar_lea.vmem %s0, %s243
      %p245 = pneg %p59
      %p246 = pneg %p56
      %p247 = pneg %p80
      %p248 = pneg %p77
      %p249 = pneg %p101
      %p250 = pneg %p98
      %p251 = pneg %p131
      %p252 = pneg %p128
      %s253 = smul.u32 2, %s23
      %p254 = scmp.lt.s32.totalorder %s22, 1
      %s255 = scalar_select %p254, %s22, 1
      %p256 = scmp.lt.s32.totalorder %s24, 3
      %s257 = scalar_select %p256, %s24, 3
      %p258 = scmp.lt.s32.totalorder %s253, 3
      %s259 = scalar_select %p258, %s253, 3
      %s260 = smul.addr %s257, 4
      %s261 = sadd.s32 %s259, %s260
      %s262 = smul.addr %s255, 16
      %s263 = sadd.s32 %s261, %s262
      %s264 = smul.addr %s263, 4
      %s265 = scalar_lea.vmem %s3, %s264
      %p266 = pneg %p161
      %p267 = pneg %p158
      %s268 = smul.u32 2, %s23
      %p269 = scmp.lt.s32.totalorder %s22, 1
      %s270 = scalar_select %p269, %s22, 1
      %p271 = scmp.lt.s32.totalorder %s24, 3
      %s272 = scalar_select %p271, %s24, 3
      %p273 = scmp.lt.s32.totalorder %s268, 3
      %s274 = scalar_select %p273, %s268, 3
      %s275 = smul.addr %s272, 4
      %s276 = sadd.s32 %s274, %s275
      %s277 = smul.addr %s270, 16
      %s278 = sadd.s32 %s276, %s277
      %s279 = smul.addr %s278, 4
      %s280 = scalar_lea.vmem %s4, %s279
      %p281 = pneg %p191
      %p282 = pneg %p188
      %s283 = smul.u32 2, %s23
      %p284 = scmp.lt.s32.totalorder %s22, 1
      %s285 = scalar_select %p284, %s22, 1
      %p286 = scmp.lt.s32.totalorder %s24, 3
      %s287 = scalar_select %p286, %s24, 3
      %p288 = scmp.lt.s32.totalorder %s283, 3
      %s289 = scalar_select %p288, %s283, 3
      %s290 = smul.addr %s287, 4
      %s291 = sadd.s32 %s289, %s290
      %s292 = smul.addr %s285, 16
      %s293 = sadd.s32 %s291, %s292
      %s294 = smul.addr %s293, 4
      %s295 = scalar_lea.vmem %s5, %s294
      %s296 = smul.u32 2, %s23
      %p297 = scmp.lt.s32.totalorder %s22, 1
      %s298 = scalar_select %p297, %s22, 1
      %p299 = scmp.lt.s32.totalorder %s296, 3
      %s300 = scalar_select %p299, %s296, 3
      %s301 = smul.addr %s298, 4
      %s302 = sadd.s32 %s300, %s301
      %s303 = smul.addr %s302, 4
      %s304 = scalar_lea.vmem %s0, %s303
      %s305 = smul.u32 2, %s23
      %s306 = smul.u32 2, %s23
      %p307 = scmp.lt.s32.totalorder %s22, 1
      %s308 = scalar_select %p307, %s22, 1
      %p309 = scmp.lt.s32.totalorder %s24, 3
      %s310 = scalar_select %p309, %s24, 3
      %p311 = scmp.lt.s32.totalorder %s306, 3
      %s312 = scalar_select %p311, %s306, 3
      %s313 = smul.addr %s310, 4
      %s314 = sadd.s32 %s312, %s313
      %s315 = smul.addr %s308, 16
      %s316 = sadd.s32 %s314, %s315
      %s317 = smul.addr %s316, 4
      %s318 = scalar_lea.vmem %s3, %s317
      %s319 = smul.u32 2, %s23
      %s320 = smul.u32 2, %s23
      %p321 = scmp.lt.s32.totalorder %s22, 1
      %s322 = scalar_select %p321, %s22, 1
      %p323 = scmp.lt.s32.totalorder %s24, 3
      %s324 = scalar_select %p323, %s24, 3
      %p325 = scmp.lt.s32.totalorder %s320, 3
      %s326 = scalar_select %p325, %s320, 3
      %s327 = smul.addr %s324, 4
      %s328 = sadd.s32 %s326, %s327
      %s329 = smul.addr %s322, 16
      %s330 = sadd.s32 %s328, %s329
      %s331 = smul.addr %s330, 4
      %s332 = scalar_lea.vmem %s4, %s331
      %s333 = smul.u32 2, %s23
      %s334 = smul.u32 2, %s23
      %p335 = scmp.lt.s32.totalorder %s22, 1
      %s336 = scalar_select %p335, %s22, 1
      %p337 = scmp.lt.s32.totalorder %s24, 3
      %s338 = scalar_select %p337, %s24, 3
      %p339 = scmp.lt.s32.totalorder %s334, 3
      %s340 = scalar_select %p339, %s334, 3
      %s341 = smul.addr %s338, 4
      %s342 = sadd.s32 %s340, %s341
      %s343 = smul.addr %s336, 16
      %s344 = sadd.s32 %s342, %s343
      %s345 = smul.addr %s344, 4
      %s346 = scalar_lea.vmem %s5, %s345
      %s347 = smul.u32 2, %s23
      %v349 = vld [vmem:[%s304] sm:$0xf]
      %v350 = vld [vmem:[%s304 + $0x4] sm:$0xf]
      %s351 = smul.u32 %s24, 4
      %s352 = smul.addr %s351, 4
      %s353 = scalar_lea.vmem %s1, %s352
      %v354 = vld [vmem:[%s353] sm:$0xf]
      %v355 = vld [vmem:[%s353 + $0x4] sm:$0xf]
      %v356 = vld [vmem:[%s353 + $0x8] sm:$0xf]
      %v357 = vld [vmem:[%s353 + $0xc] sm:$0xf]
      %s358 = scalar_lea.vmem %s2, %s24
      %v359 = vld [vmem:[%s358] sm:$0x1]
      %v361 = vlaneseq
      %v362 = vshrl.u32 %v361, 7
      %v363 = vsub.s32 0, %v362
      %v364 = vrot.slane %v359, %v363
      %v368 = vunpack.c.l.b16 %v349
      %v369 = vunpack.c.l.b16 %v350
      %v370 = vpack.c.b16 %v369, %v368
      %v375 = vunpack.c.l.b16 %v354
      %v376 = vunpack.c.l.b16 %v355
      %v377 = vunpack.c.l.b16 %v356
      %v378 = vunpack.c.l.b16 %v357
      %v379 = vpack.c.b16 %v376, %v375
      %v380 = vpack.c.b16 %v378, %v377
      %vm383 = vcmask 261120
      %v385 = vsel %vm383, %v370, 0
      %387 = vmatprep.subr.bf16.mxu0 0
      %388 = vmatpush1.bf16.msra.mxu0 0
      %389 = vmatprep.subr.bf16.mxu0 0
      %390 = vmatpush1.bf16.msra.mxu0 0
      %391 = vmatprep.subr.bf16.mxu0 0
      %392 = vmatpush1.bf16.msra.mxu0 0
      %393 = vmatprep.subr.bf16.mxu0 0
      %394 = vmatpush1.bf16.msra.mxu0 0
      %395 = vmatprep.subr.bf16.mxu0 0
      %396 = vmatpush1.bf16.msra.mxu0 0
      %397 = vmatprep.subr.bf16.mxu0 0
      %398 = vmatpush1.bf16.msra.mxu0 0
      %399 = vmatprep.subr.bf16.mxu0 0
      %400 = vmatpush1.bf16.msra.mxu0 %v380
      %401 = vmatprep.subr.bf16.mxu0 0
      %402 = vmatpush1.bf16.msra.mxu0 %v379
      %403 = vmatprep.subr.bf16.mxu0 0
      %404 = vmatpush2.bf16.msra.mxu0 0
      %405 = vmatprep.subr.bf16.mxu0 0
      %406 = vmatpush2.bf16.msra.mxu0 0
      %407 = vmatprep.subr.bf16.mxu0 0
      %408 = vmatpush2.bf16.msra.mxu0 0
      %409 = vmatprep.subr.bf16.mxu0 0
      %410 = vmatpush2.bf16.msra.mxu0 0
      %411 = vmatprep.subr.bf16.mxu0 0
      %412 = vmatpush2.bf16.msra.mxu0 0
      %413 = vmatprep.subr.bf16.mxu0 0
      %414 = vmatpush2.bf16.msra.mxu0 0
      %415 = vmatprep.subr.bf16.mxu0 0
      %416 = vmatpush2.bf16.msra.mxu0 0
      %417 = vmatprep.subr.bf16.mxu0 0
      %418 = vmatpush2.bf16.msra.mxu0 0
      %419 = vmatprep.mubr.bf16.mxu0 0
      %420 = vmatmul.mubr.bf16.gmra.mxu0 %v385
      %v421 = vpop.f32.mrf.mxu0
      %v422 = vadd.f32 %v364, %v421
      %v423 = vpop.f32.mrf.mxu0
      %v424 = vpop.f32.mrf.mxu0
      %v425 = vadd.f32 %v364, %v424
      %v426 = vpop.f32.mrf.mxu0
      %427 = vdwg.mxu0
      %v428 = vmul.f32 %v422, 0.35355338
      %v429 = vmul.f32 %v425, 0.35355338
      %v430 = vpack.c.bf16 %v429, %v428
      %v432 = vunpack.c.l.b16 %v430
      %v433 = vunpack.c.h.b16 %v430
      %v434 = vpack.c.b16 %v432, %v432
      %v435 = vpack.c.b16 %v433, %v433
      %vm438 = vcmask 60416
      %439 = vst.msk [vmem:[%s318] sm:$0xf] %vm438, %v434
      %440 = vst.msk [vmem:[%s318 + $0x4] sm:$0xf] %vm438, %v435
      %v441 = vpack.c.bf16 %v425, %v422
      %v443 = vunpack.c.l.b16 %v441
      %v444 = vunpack.c.h.b16 %v441
      %v445 = vpack.c.b16 %v443, %v443
      %v446 = vpack.c.b16 %v444, %v444
      %447 = vrot.lane.b32.xlu0 %v445, 120
      %v448 = vpop.permute.xlu0 %447
      %449 = vrot.lane.b32.xlu0 %v446, 120
      %v450 = vpop.permute.xlu0 %449
      %453 = vst.msk [vmem:[%s332] sm:$0xf] %vm438, %v448
      %454 = vst.msk [vmem:[%s332 + $0x4] sm:$0xf] %vm438, %v450
      %455 = vrot.lane.b32.xlu0 %v445, 112
      %v456 = vpop.permute.xlu0 %455
      %457 = vrot.lane.b32.xlu0 %v446, 112
      %v458 = vpop.permute.xlu0 %457
      %461 = vst.msk [vmem:[%s346] sm:$0xf] %vm438, %v456
      %462 = vst.msk [vmem:[%s346 + $0x4] sm:$0xf] %vm438, %v458
      %s463 = smul.u32 2, %s23
      %p464 = scmp.lt.s32.totalorder %s22, 1
      %s465 = scalar_select %p464, %s22, 1
      %p466 = scmp.lt.s32.totalorder %s24, 3
      %s467 = scalar_select %p466, %s24, 3
      %p468 = scmp.lt.s32.totalorder %s463, 3
      %s469 = scalar_select %p468, %s463, 3
      %s470 = smul.addr %s467, 4
      %s471 = sadd.s32 %s469, %s470
      %s472 = smul.addr %s465, 16
      %s473 = sadd.s32 %s471, %s472
      %s474 = smul.addr %s473, 4
      %s475 = scalar_lea.vmem %s3, %s474
      %s476 = smul.u32 2, %s23
      %p477 = scmp.lt.s32.totalorder %s22, 1
      %s478 = scalar_select %p477, %s22, 1
      %p479 = scmp.lt.s32.totalorder %s24, 3
      %s480 = scalar_select %p479, %s24, 3
      %p481 = scmp.lt.s32.totalorder %s476, 3
      %s482 = scalar_select %p481, %s476, 3
      %s483 = smul.addr %s480, 4
      %s484 = sadd.s32 %s482, %s483
      %s485 = smul.addr %s478, 16
      %s486 = sadd.s32 %s484, %s485
      %s487 = smul.addr %s486, 4
      %s488 = scalar_lea.vmem %s4, %s487
      %s489 = smul.u32 2, %s23
      %p490 = scmp.lt.s32.totalorder %s22, 1
      %s491 = scalar_select %p490, %s22, 1
      %p492 = scmp.lt.s32.totalorder %s24, 3
      %s493 = scalar_select %p492, %s24, 3
      %p494 = scmp.lt.s32.totalorder %s489, 3
      %s495 = scalar_select %p494, %s489, 3
      %s496 = smul.addr %s493, 4
      %s497 = sadd.s32 %s495, %s496
      %s498 = smul.addr %s491, 16
      %s499 = sadd.s32 %s497, %s498
      %s500 = smul.addr %s499, 4
      %s501 = scalar_lea.vmem %s5, %s500
      // Predicated region
      $region33: #{tpu_custom_call.1} parent=31 // pred_check
        %p502 = pneg %p128
      $region34: #{tpu_custom_call.1} parent=31 // pred_check_branch
        %504 = sbr.rel (%p502) target = $region36
      $region35: #{tpu_custom_call.1} parent=31 // pred_region
        %s505 = smul.u32 2, %s23
      $region36: #{tpu_custom_call.1} parent=31 // pred_fallthru
        _
      // Predicated region
      $region37: #{tpu_custom_call.1} parent=31 // pred_check
        %p506 = pneg %p158
      $region38: #{tpu_custom_call.1} parent=31 // pred_check_branch
        %508 = sbr.rel (%p506) target = $region40
      $region39: #{tpu_custom_call.1} parent=31 // pred_region
        %s509 = smul.u32 2, %s23
      $region40: #{tpu_custom_call.1} parent=31 // pred_fallthru
        _
      // Predicated region
      $region41: #{tpu_custom_call.1} parent=31 // pred_check
        %p510 = pneg %p188
      $region42: #{tpu_custom_call.1} parent=31 // pred_check_branch
        %512 = sbr.rel (%p510) target = $region44
      $region43: #{tpu_custom_call.1} parent=31 // pred_region
        %s513 = smul.u32 2, %s23
      $region44: #{tpu_custom_call.1} parent=31 // pred_fallthru
        _
    $region32: #{tpu_custom_call.1} parent=5 // pred_fallthru
      _
    %p514 = scmp.le.s32.totalorder 2, %s12
    // Predicated region
    $region45: #{tpu_custom_call.1} parent=5 // pred_check
      %p515 = pneg %p514
    $region46: #{tpu_custom_call.1} parent=5 // pred_check_branch
      %517 = sbr.rel (%p515) target = $region48
    $region47: #{tpu_custom_call.1} parent=5 // pred_region
      %s518 = ssub.s32 %s12, 2
      // Predicated region
      $region49: #{tpu_custom_call.1} parent=47 // pred_check
        %p519 = pneg %p134
      $region50: #{tpu_custom_call.1} parent=47 // pred_check_branch
        %521 = sbr.rel (%p519) target = $region52
      $region51: #{tpu_custom_call.1} parent=47 // pred_region
        %s522 = smul.u32 2, %s26
        %p523 = scmp.lt.s32.totalorder %s25, 1
        %s524 = scalar_select %p523, %s25, 1
        %p525 = scmp.lt.s32.totalorder %s27, 3
        %s526 = scalar_select %p525, %s27, 3
        %p527 = scmp.lt.s32.totalorder %s522, 3
        %s528 = scalar_select %p527, %s522, 3
        %s529 = smul.addr %s526, 4
        %s530 = sadd.s32 %s528, %s529
        %s531 = smul.addr %s524, 16
        %s532 = sadd.s32 %s530, %s531
        %s533 = smul.addr %s532, 4
        %s534 = scalar_lea.vmem %s3, %s533
      $region52: #{tpu_custom_call.1} parent=47 // pred_fallthru
        _
      // Predicated region
      $region53: #{tpu_custom_call.1} parent=47 // pred_check
        %p535 = pneg %p164
      $region54: #{tpu_custom_call.1} parent=47 // pred_check_branch
        %537 = sbr.rel (%p535) target = $region56
      $region55: #{tpu_custom_call.1} parent=47 // pred_region
        %s538 = smul.u32 2, %s26
        %p539 = scmp.lt.s32.totalorder %s25, 1
        %s540 = scalar_select %p539, %s25, 1
        %p541 = scmp.lt.s32.totalorder %s27, 3
        %s542 = scalar_select %p541, %s27, 3
        %p543 = scmp.lt.s32.totalorder %s538, 3
        %s544 = scalar_select %p543, %s538, 3
        %s545 = smul.addr %s542, 4
        %s546 = sadd.s32 %s544, %s545
        %s547 = smul.addr %s540, 16
        %s548 = sadd.s32 %s546, %s547
        %s549 = smul.addr %s548, 4
        %s550 = scalar_lea.vmem %s4, %s549
      $region56: #{tpu_custom_call.1} parent=47 // pred_fallthru
        _
      // Predicated region
      $region57: #{tpu_custom_call.1} parent=47 // pred_check
        %p551 = pneg %p194
      $region58: #{tpu_custom_call.1} parent=47 // pred_check_branch
        %553 = sbr.rel (%p551) target = $region60
      $region59: #{tpu_custom_call.1} parent=47 // pred_region
        %s554 = smul.u32 2, %s26
        %p555 = scmp.lt.s32.totalorder %s25, 1
        %s556 = scalar_select %p555, %s25, 1
        %p557 = scmp.lt.s32.totalorder %s27, 3
        %s558 = scalar_select %p557, %s27, 3
        %p559 = scmp.lt.s32.totalorder %s554, 3
        %s560 = scalar_select %p559, %s554, 3
        %s561 = smul.addr %s558, 4
        %s562 = sadd.s32 %s560, %s561
        %s563 = smul.addr %s556, 16
        %s564 = sadd.s32 %s562, %s563
        %s565 = smul.addr %s564, 4
        %s566 = scalar_lea.vmem %s5, %s565
      $region60: #{tpu_custom_call.1} parent=47 // pred_fallthru
        _
    $region48: #{tpu_custom_call.1} parent=5 // pred_fallthru
      _
  $region6: #{tpu_custom_call.1} parent=0 // loop_footer
    %s16 = sadd.s32 1, %s12
  $region7: #{tpu_custom_call.1} parent=0 // loop_footer_branch
    %11 = sbr.rel target = $region3
  $region8: #{tpu_custom_call.1} parent=0 // loop_exit
    _

</llo_original>
